<compile_context>
chip_gen: v5e
topology: v5e:2x2
jax: 0.10.0
libtpu: 0.0.40
codegen_flags: <defaults>
</compile_context>

<pallas_src>
import functools

import jax
import jax.numpy as jnp
from jax.experimental import pallas as pl
from jax.experimental.pallas import tpu as pltpu

HIDDEN_DIM = 128  # fixed by the module definition (nn.Linear(input_dim, 128))


def _round_up(n, m):
    return ((n + m - 1) // m) * m


def generator_kernel(x_ref, w1_ref, b1_ref, w2_ref, b2_ref, o_ref):
    # x arrives as f32 straight from HBM (no wrapper cast pass); cast to bf16
    # on the VPU for the MXU.
    x_bf = x_ref[...].astype(jnp.bfloat16)

    # Hidden layer: bf16 MXU matmul, f32 accumulation; bias + ReLU in f32 (VPU).
    h = jnp.dot(x_bf, w1_ref[...], preferred_element_type=jnp.float32)
    h = jnp.maximum(h + b1_ref[...], 0.0)

    # Output layer: bf16 MXU operands, f32 accumulate, bias + tanh (EUP) in
    # f32, store bf16 (halves the dominant HBM writeback term).
    y = jnp.dot(h.astype(jnp.bfloat16), w2_ref[...],
                preferred_element_type=jnp.float32)
    y = y + b2_ref[...]
    o_ref[...] = jnp.tanh(y).astype(o_ref.dtype)


@functools.partial(jax.jit, static_argnames=("block_batch",))
def generator_forward(x, w1, b1, w2, b2, *, block_batch=4096):
    """x: (B, input_dim) f32; w1: (input_dim, 128); b1: (1, 128);
       w2: (128, output_dim); b2: (1, output_dim).
       Returns (B, output_dim) bfloat16 (cast in the caller if f32 is needed)."""
    B, in_dim = x.shape
    hidden = w1.shape[1]
    out_dim = w2.shape[1]

    # --- batch tiling -----------------------------------------------------
    # Small batches: one block covering the whole array (block dims == full
    # array dims is always a legal layout, no padding needed).
    # Large batches: spread evenly over tiles, rounded to a multiple of 16
    # (bf16 sublane packing for the hidden/output tiles); the tail tile, if
    # any, is handled by Pallas' partial-block masking -- no jnp.pad of x.
    if B <= block_batch:
        bt = B
    else:
        nt = pl.cdiv(B, block_batch)
        bt = _round_up(pl.cdiv(B, nt), 16)
    grid = (pl.cdiv(B, bt),)

    # Tiny weights: bf16 halves their one-time DMA and resident VMEM.
    w1_bf = w1.astype(jnp.bfloat16)
    w2_bf = w2.astype(jnp.bfloat16)
    b1_f = b1.astype(jnp.float32)
    b2_f = b2.astype(jnp.float32)

    cost = pl.CostEstimate(
        flops=2 * B * (in_dim * hidden + hidden * out_dim),
        transcendentals=B * out_dim,
        bytes_accessed=(x.size * 4 + w1_bf.size * 2 + w2_bf.size * 2
                        + b1_f.size * 4 + b2_f.size * 4 + B * out_dim * 2),
    )

    # TODO(synk): on v7x, verify in the trace that both TensorCores are active;
    # if plain "parallel" does not shard the batch grid across TCs, switch to
    # pltpu.CORE_PARALLEL or an explicit pl.core_map over a tensorcore mesh.
    out = pl.pallas_call(
        generator_kernel,
        out_shape=jax.ShapeDtypeStruct((B, out_dim), jnp.bfloat16),
        grid=grid,
        in_specs=[
            # Activations: tiled over the batch grid axis (pipelined).
            pl.BlockSpec((bt, in_dim), lambda i: (i, 0)),
            # Weights / biases: whole-array blocks, constant index_map so they
            # are DMA'd once and stay VMEM-resident across grid steps.
            pl.BlockSpec((in_dim, hidden), lambda i: (0, 0)),
            pl.BlockSpec((1, hidden), lambda i: (0, 0)),
            pl.BlockSpec((hidden, out_dim), lambda i: (0, 0)),
            pl.BlockSpec((1, out_dim), lambda i: (0, 0)),
        ],
        out_specs=pl.BlockSpec((bt, out_dim), lambda i: (i, 0)),
        compiler_params=pltpu.CompilerParams(
            dimension_semantics=("parallel",),
            vmem_limit_bytes=32 << 20,  # fits every gen incl. v7x (64 MiB VMEM)
        ),
        cost_estimate=cost,
    )(x, w1_bf, b1_f, w2_bf, b2_f)
    return out


def init_params(key, input_dim, hidden_dim, output_dim):
    # Deterministic synthetic init mimicking PyTorch Linear's
    # U(-1/sqrt(fan_in), 1/sqrt(fan_in)).
    k1, k2, k3, k4 = jax.random.split(key, 4)
    lim1 = 1.0 / jnp.sqrt(input_dim)
    lim2 = 1.0 / jnp.sqrt(hidden_dim)
    w1 = jax.random.uniform(k1, (input_dim, hidden_dim), jnp.float32, -lim1, lim1)
    b1 = jax.random.uniform(k2, (1, hidden_dim), jnp.float32, -lim1, lim1)
    w2 = jax.random.uniform(k3, (hidden_dim, output_dim), jnp.float32, -lim2, lim2)
    b2 = jax.random.uniform(k4, (1, output_dim), jnp.float32, -lim2, lim2)
    return w1, b1, w2, b2


if __name__ == "__main__":
    INPUT_DIM = 32     # latent noise dim
    OUTPUT_DIM = 64
    BATCH = 8

    key = jax.random.PRNGKey(0)
    k_x, k_p = jax.random.split(key)
    x = jax.random.normal(k_x, (BATCH, INPUT_DIM), dtype=jnp.float32)
    w1, b1, w2, b2 = init_params(k_p, INPUT_DIM, HIDDEN_DIM, OUTPUT_DIM)

    out = generator_forward(x, w1, b1, w2, b2)
    out = jax.block_until_ready(out)

    # Pure-JAX f32 reference (kernel uses bf16 MXU operands and a bf16 output
    # store -> loose tolerance; tanh output is bounded in [-1, 1]).
    ref = jnp.tanh(jnp.maximum(x @ w1 + b1, 0.0) @ w2 + b2)
    assert out.shape == (BATCH, OUTPUT_DIM), out.shape
    assert out.dtype == jnp.bfloat16, out.dtype
    err = float(jnp.max(jnp.abs(out.astype(jnp.float32) - ref)))
    assert err < 5e-2, err

    print("KERNEL_OK")
</pallas_src>

<mosaic_0001>
module attributes {stable_mosaic.version = 11 : i64} {
  func.func @generator_kernel(%arg0: i32, %arg1: memref<8x32xf32, #tpu.memory_space<vmem>>, %arg2: memref<32x128xbf16, #tpu.memory_space<vmem>>, %arg3: memref<1x128xf32, #tpu.memory_space<vmem>>, %arg4: memref<128x64xbf16, #tpu.memory_space<vmem>>, %arg5: memref<1x64xf32, #tpu.memory_space<vmem>>, %arg6: memref<8x64xbf16, #tpu.memory_space<vmem>>) attributes {dimension_semantics = [#tpu.dimension_semantics<parallel>], iteration_bounds = array<i64: 1>, scalar_prefetch = 0 : i64, scratch_operands = 0 : i64, tpu.core_type = #tpu.core_type<tc>, window_params = [{transform_indices = @transform_0, window_bounds = array<i64: 8, 32>}, {pipeline_mode = #tpu.pipeline_mode<synchronous>, transform_indices = @transform_1, window_bounds = array<i64: 32, 128>}, {pipeline_mode = #tpu.pipeline_mode<synchronous>, transform_indices = @transform_2, window_bounds = array<i64: 1, 128>}, {pipeline_mode = #tpu.pipeline_mode<synchronous>, transform_indices = @transform_3, window_bounds = array<i64: 128, 64>}, {pipeline_mode = #tpu.pipeline_mode<synchronous>, transform_indices = @transform_4, window_bounds = array<i64: 1, 64>}, {transform_indices = @transform_5, window_bounds = array<i64: 8, 64>}]} {
    %c0 = arith.constant 0 : index
    %c0_0 = arith.constant 0 : index
    %0 = vector.load %arg1[%c0, %c0_0] : memref<8x32xf32, #tpu.memory_space<vmem>>, vector<8x32xf32>
    %1 = arith.truncf %0 : vector<8x32xf32> to vector<8x32xbf16>
    %c0_1 = arith.constant 0 : index
    %c0_2 = arith.constant 0 : index
    %2 = vector.load %arg2[%c0_1, %c0_2] : memref<32x128xbf16, #tpu.memory_space<vmem>>, vector<32x128xbf16>
    %cst = arith.constant dense<0.000000e+00> : vector<8x128xf32>
    %3 = tpu.matmul %1, %2, %cst {dimension_numbers = #tpu.dot_dimension_numbers<[1], [0], [0], [1], [0, 0, 1, 1], [], []>} : vector<8x32xbf16>, vector<32x128xbf16>, vector<8x128xf32> -> vector<8x128xf32>
    %c0_3 = arith.constant 0 : index
    %c0_4 = arith.constant 0 : index
    %4 = vector.load %arg3[%c0_3, %c0_4] : memref<1x128xf32, #tpu.memory_space<vmem>>, vector<1x128xf32>
    %5 = vector.broadcast %4 : vector<1x128xf32> to vector<8x128xf32>
    %6 = arith.addf %3, %5 : vector<8x128xf32>
    %cst_5 = arith.constant 0.000000e+00 : f32
    %7 = vector.broadcast %cst_5 : f32 to vector<8x128xf32>
    %8 = arith.maximumf %6, %7 : vector<8x128xf32>
    %9 = arith.truncf %8 : vector<8x128xf32> to vector<8x128xbf16>
    %c0_6 = arith.constant 0 : index
    %c0_7 = arith.constant 0 : index
    %10 = vector.load %arg4[%c0_6, %c0_7] : memref<128x64xbf16, #tpu.memory_space<vmem>>, vector<128x64xbf16>
    %cst_8 = arith.constant dense<0.000000e+00> : vector<8x64xf32>
    %11 = tpu.matmul %9, %10, %cst_8 {dimension_numbers = #tpu.dot_dimension_numbers<[1], [0], [0], [1], [0, 0, 1, 1], [], []>} : vector<8x128xbf16>, vector<128x64xbf16>, vector<8x64xf32> -> vector<8x64xf32>
    %c0_9 = arith.constant 0 : index
    %c0_10 = arith.constant 0 : index
    %12 = vector.load %arg5[%c0_9, %c0_10] : memref<1x64xf32, #tpu.memory_space<vmem>>, vector<1x64xf32>
    %13 = vector.broadcast %12 : vector<1x64xf32> to vector<8x64xf32>
    %14 = arith.addf %11, %13 : vector<8x64xf32>
    %15 = math.tanh %14 : vector<8x64xf32>
    %16 = arith.truncf %15 : vector<8x64xf32> to vector<8x64xbf16>
    %c0_11 = arith.constant 0 : index
    %c0_12 = arith.constant 0 : index
    %17 = vector.load %arg6[%c0_11, %c0_12] : memref<8x64xbf16, #tpu.memory_space<vmem>>, vector<8x64xbf16>
    tpu.vector_store %arg6[%c0_11, %c0_12], %16 {strides = array<i32>} : memref<8x64xbf16, #tpu.memory_space<vmem>>, vector<8x64xbf16>,
    return
  }
  func.func @transform_0(%arg0: i32) -> (i32, i32) {
    %c0_i32 = arith.constant 0 : i32
    %c0_i32_0 = arith.constant 0 : i32
    return %arg0, %c0_i32 : i32, i32
  }
  func.func @transform_1(%arg0: i32) -> (i32, i32) {
    %c0_i32 = arith.constant 0 : i32
    %c0_i32_0 = arith.constant 0 : i32
    %c0_i32_1 = arith.constant 0 : i32
    return %c0_i32, %c0_i32_0 : i32, i32
  }
  func.func @transform_2(%arg0: i32) -> (i32, i32) {
    %c0_i32 = arith.constant 0 : i32
    %c0_i32_0 = arith.constant 0 : i32
    %c0_i32_1 = arith.constant 0 : i32
    return %c0_i32, %c0_i32_0 : i32, i32
  }
  func.func @transform_3(%arg0: i32) -> (i32, i32) {
    %c0_i32 = arith.constant 0 : i32
    %c0_i32_0 = arith.constant 0 : i32
    %c0_i32_1 = arith.constant 0 : i32
    return %c0_i32, %c0_i32_0 : i32, i32
  }
  func.func @transform_4(%arg0: i32) -> (i32, i32) {
    %c0_i32 = arith.constant 0 : i32
    %c0_i32_0 = arith.constant 0 : i32
    %c0_i32_1 = arith.constant 0 : i32
    return %c0_i32, %c0_i32_0 : i32, i32
  }
  func.func @transform_5(%arg0: i32) -> (i32, i32) {
    %c0_i32 = arith.constant 0 : i32
    %c0_i32_0 = arith.constant 0 : i32
    return %arg0, %c0_i32 : i32, i32
  }
}

</mosaic_0001>

<llo_original>
// kernel: generator_forward.1
$region0: #{generator_forward.1}
  #allocation0 [shape = 'u32[]', space=smem, size = 0x4, offset = 0x4, fixed_abs, tag = 'smem constant byte address 0x4 - core index']
  #allocation1 [shape = 'u32[72,128]{1,0:T(1,128)}', space=vmem, size = 0x9000, scoped, tag = 'internal scratch']
  %s0 = inlined_call_operand.vmem [shape: f32[8,32], index: 0, kind: input, shape index: {}]
  %s1 = inlined_call_operand.vmem [shape: bf16[32,128], index: 1, kind: input, shape index: {}]
  %s2 = inlined_call_operand.vmem [shape: f32[1,128], index: 2, kind: input, shape index: {}]
  %s3 = inlined_call_operand.vmem [shape: bf16[128,64], index: 3, kind: input, shape index: {}]
  %s4 = inlined_call_operand.vmem [shape: f32[1,64], index: 4, kind: input, shape index: {}]
  %s5 = inlined_call_operand.hbm [shape: bf16[8,64], index: 5, kind: output, shape index: {}]
  %s6 = sld [smem:[#allocation0]]
  $region30: #{generator_forward.1} parent=0
    _
  %s8 = ssub.s32 1, %s6
  %s9 = scalar_select 0, %s8, %s6
  $region1: #{generator_forward.1} parent=0
    #allocation2 [shape = 'u8[2048]{0}', space=vmem, size = 0x800, scoped, tag = 'output window, operand 0, single buffered']
    #allocation3 [shape = 's32[1]{0}', space=sflag, size = 0x4, scoped, tag = 'scoped memory for generator_forward.1']
    %10 = vsyncpa [#allocation3], 0
    // Predicated region
    $region2: #{generator_forward.1} parent=1 // pred_check
      _
    $region3: #{generator_forward.1} parent=1 // pred_check_branch
      %12 = sbr.rel (0) target = $region5
    $region4: #{generator_forward.1} parent=1 // pred_region
      _
    $region5: #{generator_forward.1} parent=1 // pred_fallthru
      _
    // Predicated region
    $region6: #{generator_forward.1} parent=1 // pred_check
      _
    $region7: #{generator_forward.1} parent=1 // pred_check_branch
      %14 = sbr.rel (0) target = $region9
    $region8: #{generator_forward.1} parent=1 // pred_region
      _
    $region9: #{generator_forward.1} parent=1 // pred_fallthru
      _
    // Predicated region
    $region10: #{generator_forward.1} parent=1 // pred_check
      _
    $region11: #{generator_forward.1} parent=1 // pred_check_branch
      %16 = sbr.rel (0) target = $region13
    $region12: #{generator_forward.1} parent=1 // pred_region
      _
    $region13: #{generator_forward.1} parent=1 // pred_fallthru
      _
    // Predicated region
    $region14: #{generator_forward.1} parent=1 // pred_check
      _
    $region15: #{generator_forward.1} parent=1 // pred_check_branch
      %18 = sbr.rel (0) target = $region17
    $region16: #{generator_forward.1} parent=1 // pred_region
      _
    $region17: #{generator_forward.1} parent=1 // pred_fallthru
      _
    // Predicated region
    $region18: #{generator_forward.1} parent=1 // pred_check
      _
    $region19: #{generator_forward.1} parent=1 // pred_check_branch
      %20 = sbr.rel (0) target = $region21
    $region20: #{generator_forward.1} parent=1 // pred_region
      _
    $region21: #{generator_forward.1} parent=1 // pred_fallthru
      _
    %v22 = vld [vmem:[%s0] sm:$0xff]
    %v23 = vpack.c.bf16 %v22, %v22
    %v24 = vld [vmem:[%s1] sm:$0xf]
    %v25 = vld [vmem:[%s1 + $0x4] sm:$0xf]
    %v26 = vld [vmem:[%s1 + $0x8] sm:$0xf]
    %v27 = vld [vmem:[%s1 + $0xc] sm:$0xf]
    %v28 = vld [vmem:[%s2] sm:$0x1]
    %v30 = vperm.slane %v28, 0
    %v36 = vunpack.c.l.b16 %v24
    %v37 = vunpack.c.l.b16 %v25
    %v38 = vunpack.c.l.b16 %v26
    %v39 = vunpack.c.l.b16 %v27
    %v40 = vpack.c.b16 %v37, %v36
    %v41 = vpack.c.b16 %v39, %v38
    %vm44 = vcmask 261120
    %v46 = vsel %vm44, %v23, 0
    %48 = vmatpush.bf16.msra.mxu0 0
    %49 = vmatpush.bf16.msra.mxu0 0
    %50 = vmatpush.bf16.msra.mxu0 0
    %51 = vmatpush.bf16.msra.mxu0 0
    %52 = vmatpush.bf16.msra.mxu0 0
    %53 = vmatpush.bf16.msra.mxu0 0
    %54 = vmatpush.bf16.msra.mxu0 %v41
    %55 = vmatpush.bf16.msra.mxu0 %v40
    %56 = vmatmul.bf16.gmra.mxu0 %v46
    %v57 = vpop.f32.mrf.mxu0
    %v58 = vadd.f32 %v30, %v57
    %v59 = vpop.f32.mrf.mxu0
    %60 = vdwg.mxu0
    %v61 = vmax.f32 %v58, 0.0
    %v62 = vpack.c.bf16 %v61, %v61
    %v63 = vld [vmem:[%s3] sm:$0xf]
    %v64 = vld [vmem:[%s3 + $0x4] sm:$0xf]
    %v65 = vld [vmem:[%s3 + $0x8] sm:$0xf]
    %v66 = vld [vmem:[%s3 + $0xc] sm:$0xf]
    %v67 = vld [vmem:[%s3 + $0x10] sm:$0xf]
    %v68 = vld [vmem:[%s3 + $0x14] sm:$0xf]
    %v69 = vld [vmem:[%s3 + $0x18] sm:$0xf]
    %v70 = vld [vmem:[%s3 + $0x1c] sm:$0xf]
    %v71 = vld [vmem:[%s3 + $0x20] sm:$0xf]
    %v72 = vld [vmem:[%s3 + $0x24] sm:$0xf]
    %v73 = vld [vmem:[%s3 + $0x28] sm:$0xf]
    %v74 = vld [vmem:[%s3 + $0x2c] sm:$0xf]
    %v75 = vld [vmem:[%s3 + $0x30] sm:$0xf]
    %v76 = vld [vmem:[%s3 + $0x34] sm:$0xf]
    %v77 = vld [vmem:[%s3 + $0x38] sm:$0xf]
    %v78 = vld [vmem:[%s3 + $0x3c] sm:$0xf]
    %v79 = vld [vmem:[%s4] sm:$0x1]
    %v81 = vperm.slane %v79, 0
    %v99 = vunpack.c.l.b16 %v63
    %v100 = vunpack.c.l.b16 %v64
    %v101 = vunpack.c.l.b16 %v65
    %v102 = vunpack.c.l.b16 %v66
    %v103 = vunpack.c.l.b16 %v67
    %v104 = vunpack.c.l.b16 %v68
    %v105 = vunpack.c.l.b16 %v69
    %v106 = vunpack.c.l.b16 %v70
    %v107 = vunpack.c.l.b16 %v71
    %v108 = vunpack.c.l.b16 %v72
    %v109 = vunpack.c.l.b16 %v73
    %v110 = vunpack.c.l.b16 %v74
    %v111 = vunpack.c.l.b16 %v75
    %v112 = vunpack.c.l.b16 %v76
    %v113 = vunpack.c.l.b16 %v77
    %v114 = vunpack.c.l.b16 %v78
    %v115 = vpack.c.b16 %v100, %v99
    %v116 = vpack.c.b16 %v102, %v101
    %v117 = vpack.c.b16 %v104, %v103
    %v118 = vpack.c.b16 %v106, %v105
    %v119 = vpack.c.b16 %v108, %v107
    %v120 = vpack.c.b16 %v110, %v109
    %v121 = vpack.c.b16 %v112, %v111
    %v122 = vpack.c.b16 %v114, %v113
    %131 = vmatpush.bf16.msra.mxu0 %v122
    %132 = vmatpush.bf16.msra.mxu0 %v121
    %133 = vmatpush.bf16.msra.mxu0 %v120
    %134 = vmatpush.bf16.msra.mxu0 %v119
    %135 = vmatpush.bf16.msra.mxu0 %v118
    %136 = vmatpush.bf16.msra.mxu0 %v117
    %137 = vmatpush.bf16.msra.mxu0 %v116
    %138 = vmatpush.bf16.msra.mxu0 %v115
    %139 = vmatmul.bf16.gmra.mxu0 %v62
    %v140 = vpop.f32.mrf.mxu0
    %v141 = vadd.f32 %v81, %v140
    %v142 = vpop.f32.mrf.mxu0
    %143 = vdwg.mxu0
    %v144 = vtanh.pop %v141
    %v145 = vpack.c.bf16 %v144, %v144
    %vm146 = vcmask 519168
    %147 = vst.msk [vmem:[#allocation2] sm:$0xf] %vm146, %v145
    // Predicated region
    $region22: #{generator_forward.1} parent=1 // pred_check
      _
    $region23: #{generator_forward.1} parent=1 // pred_check_branch
      %149 = sbr.rel (0) target = $region25
    $region24: #{generator_forward.1} parent=1 // pred_region
      %151 = vsyncadd [#allocation3], 0
      %s153 = sshll.u32 [#allocation2], 4
      %s154 = int_to_ptr.vmem [resolvable:$true] %s153
      %s155 = sshll.u32 %s5, 4
      %s156 = int_to_ptr.hbm [resolvable:$true] %s155
      %158 = dma.vmem_to_hbm [thread:$0]  %s154, 64, %s156, [#allocation3]
    $region25: #{generator_forward.1} parent=1 // pred_fallthru
      _
    // Predicated region
    $region26: #{generator_forward.1} parent=1 // pred_check
      _
    $region27: #{generator_forward.1} parent=1 // pred_check_branch
      %160 = sbr.rel (0) target = $region29
    $region28: #{generator_forward.1} parent=1 // pred_region
      %162 = dma.done [#allocation3], 64
    $region29: #{generator_forward.1} parent=1 // pred_fallthru
      _
    %163 = vsyncpa [#allocation3], 1

</llo_original>
